<compile_context>
chip_gen: v7x
topology: tpu7x:2x2x1
jax: 0.10.0
libtpu: 0.0.40
codegen_flags: <defaults>
</compile_context>

<pallas_src>
import math

import jax
import jax.numpy as jnp
from jax.experimental import pallas as pl
from jax.experimental.pallas import tpu as pltpu

D_IN = 100          # Linear in_features (fed unpadded; MXU masks the K tail)
D_OUT = 128         # Linear out_features
SQRT_D = math.sqrt(float(D_OUT))
TM_MAX = 2048       # max row tile (128-multiple so the k-tile lane dim is legal)


def _fused_kernel(q_ref, w_ref, b_ref, k_ref, o_ref):
    # v1 = q @ W + b   (MXU matmul, f32 accumulation; K=100, Mosaic masks tail)
    v1 = jnp.dot(q_ref[...], w_ref[...],
                 preferred_element_type=jnp.float32) + b_ref[...]
    # v2 = k^T + v1    (k tile arrives as (D_OUT, TM); transpose in the
    # shipping dtype on the XLU, then widen to f32 for the add)
    kt = k_ref[...].T
    # v3 = v2 / sqrt(d)
    v3 = (kt.astype(jnp.float32) + v1) * (1.0 / SQRT_D)
    # v4 = softmax(v3, axis=-1)  (numerically stable; lane reduction via XLU,
    # reciprocal on the EUP slot)
    m = jnp.max(v3, axis=-1, keepdims=True)
    e = jnp.exp(v3 - m)
    s = jnp.sum(e, axis=-1, keepdims=True)
    o_ref[...] = (e * pl.reciprocal(s, approx=True)).astype(o_ref.dtype)


def _choose_tm(Sq, B):
    """Row tile size: full Sq if small, else a 128-multiple chosen so the total
    number of grid steps splits evenly across two TensorCores (v7x) and the
    tail tile is not tiny."""
    if Sq <= TM_MAX:
        return Sq
    n_tiles = -(-Sq // TM_MAX)               # ceil
    if (B * n_tiles) % 2:                    # balance total steps across 2 TCs
        n_tiles += 1
    tm = -(-Sq // n_tiles)                   # ceil rows per tile
    tm = -(-tm // 128) * 128                 # round up to a 128 multiple
    return min(tm, TM_MAX)


def model_forward(q, k, mask, w, b, *, output_dtype=jnp.float32):
    """q: (B, Sq, D_IN), k: (B, D_OUT, Sq), mask: unused. Returns (B, Sq, D_OUT).

    q/k are consumed in whatever dtype they arrive in (ship bf16 from the
    producer to halve input HBM traffic; f32 accumulation is kept in-kernel).
    output_dtype=jnp.bfloat16 halves output traffic if downstream permits.
    """
    del mask  # unused in the reference forward
    B, Sq, Din = q.shape
    assert Din == D_IN
    assert k.shape == (B, D_OUT, Sq)

    TM = _choose_tm(Sq, B)
    grid = (B, pl.cdiv(Sq, TM))

    # Weights match q's shipping dtype for a clean MXU feed (tiny, resident).
    wp = w.astype(q.dtype)
    b2d = b.reshape(1, D_OUT).astype(jnp.float32)

    # Advisory cost estimate so XLA schedules around this mem-bound call.
    elem = B * Sq
    itemsize_q = jnp.dtype(q.dtype).itemsize
    itemsize_k = jnp.dtype(k.dtype).itemsize
    itemsize_o = jnp.dtype(output_dtype).itemsize
    cost = pl.CostEstimate(
        flops=2 * elem * D_IN * D_OUT + 6 * elem * D_OUT,
        transcendentals=elem * D_OUT,
        bytes_accessed=(elem * D_IN * itemsize_q
                        + elem * D_OUT * itemsize_k
                        + elem * D_OUT * itemsize_o
                        + D_IN * D_OUT * jnp.dtype(wp.dtype).itemsize
                        + D_OUT * 4),
    )

    out = pl.pallas_call(
        _fused_kernel,
        out_shape=jax.ShapeDtypeStruct((B, Sq, D_OUT), output_dtype),
        grid=grid,
        in_specs=[
            # q tile: (TM, D_IN) rows of the current batch, unpadded (100 is
            # the full last dim, so the BlockSpec is legal), pipelined over i.
            pl.BlockSpec((None, TM, D_IN), lambda bb, i: (bb, i, 0)),
            # Weights / bias: constant index_map -> stay resident in VMEM.
            pl.BlockSpec((D_IN, D_OUT), lambda bb, i: (0, 0)),
            pl.BlockSpec((1, D_OUT), lambda bb, i: (0, 0)),
            # k tile in its native (B, D_OUT, Sq) layout; transposed in-kernel.
            pl.BlockSpec((None, D_OUT, TM), lambda bb, i: (bb, 0, i)),
        ],
        out_specs=pl.BlockSpec((None, TM, D_OUT), lambda bb, i: (bb, i, 0)),
        compiler_params=pltpu.CompilerParams(
            dimension_semantics=("parallel", "parallel"),
            vmem_limit_bytes=32 * 1024 * 1024,
        ),
        cost_estimate=cost,
    )(q, wp, b2d, k)

    return out


def _reference(q, k, mask, w, b):
    """Pure-JAX reference for correctness checking."""
    del mask
    v1 = jnp.einsum("bsd,dk->bsk", q, w) + b
    v2 = jnp.transpose(k, (0, 2, 1)) + v1
    v3 = v2 / SQRT_D
    return jax.nn.softmax(v3, axis=-1)


def _make_inputs(key, B, Sq):
    kq, kk, km, kw, kb = jax.random.split(key, 5)
    q = jax.random.normal(kq, (B, Sq, D_IN), dtype=jnp.float32)
    k = jax.random.normal(kk, (B, D_OUT, Sq), dtype=jnp.float32)
    mask = jax.random.normal(km, (B, Sq, D_OUT), dtype=jnp.float32)  # unused
    # Deterministic Linear(100, 128) parameters (PyTorch-style uniform init).
    bound = 1.0 / math.sqrt(D_IN)
    w = jax.random.uniform(kw, (D_IN, D_OUT), minval=-bound, maxval=bound,
                           dtype=jnp.float32)
    b = jax.random.uniform(kb, (D_OUT,), minval=-bound, maxval=bound,
                           dtype=jnp.float32)
    return q, k, mask, w, b


if __name__ == "__main__":
    key = jax.random.PRNGKey(0)

    # Small-shape check (consistent with the module: q (B, Sq, 100)).
    B, Sq = 2, 8
    q, k, mask, w, b = _make_inputs(key, B, Sq)
    out = jax.block_until_ready(model_forward(q, k, mask, w, b))
    ref = _reference(q, k, mask, w, b)
    assert out.shape == (B, Sq, D_OUT)
    assert jnp.allclose(out, ref, atol=2e-3, rtol=2e-3)

    # Exercise the tiled path (Sq > TM_MAX -> balanced 1152/1024 tiles).
    B2, Sq2 = 1, 2176
    q2, k2, mask2, w2, b2 = _make_inputs(jax.random.PRNGKey(1), B2, Sq2)
    out2 = jax.block_until_ready(model_forward(q2, k2, mask2, w2, b2))
    ref2 = _reference(q2, k2, mask2, w2, b2)
    assert out2.shape == (B2, Sq2, D_OUT)
    assert jnp.allclose(out2, ref2, atol=2e-3, rtol=2e-3)

    # Exercise the reduced-traffic bf16-output path (looser tolerance).
    out3 = jax.block_until_ready(
        model_forward(q, k, mask, w, b, output_dtype=jnp.bfloat16))
    assert out3.dtype == jnp.bfloat16
    assert jnp.allclose(out3.astype(jnp.float32), ref, atol=1e-2, rtol=1e-2)

    print("KERNEL_OK")
</pallas_src>

<mosaic_0001>
module attributes {stable_mosaic.version = 11 : i64} {
  func.func @_fused_kernel(%arg0: i32, %arg1: i32, %arg2: memref<1x8x100xf32, #tpu.memory_space<vmem>>, %arg3: memref<100x128xf32, #tpu.memory_space<vmem>>, %arg4: memref<1x128xf32, #tpu.memory_space<vmem>>, %arg5: memref<1x128x8xf32, #tpu.memory_space<vmem>>, %arg6: memref<1x8x128xf32, #tpu.memory_space<vmem>>) attributes {dimension_semantics = [#tpu.dimension_semantics<parallel>, #tpu.dimension_semantics<parallel>], iteration_bounds = array<i64: 2, 1>, scalar_prefetch = 0 : i64, scratch_operands = 0 : i64, tpu.core_type = #tpu.core_type<tc>, window_params = [{transform_indices = @transform_0, window_bounds = array<i64: 1, 8, 100>}, {pipeline_mode = #tpu.pipeline_mode<synchronous>, transform_indices = @transform_1, window_bounds = array<i64: 100, 128>}, {pipeline_mode = #tpu.pipeline_mode<synchronous>, transform_indices = @transform_2, window_bounds = array<i64: 1, 128>}, {transform_indices = @transform_3, window_bounds = array<i64: 1, 128, 8>}, {transform_indices = @transform_4, window_bounds = array<i64: 1, 8, 128>}]} {
    %c0 = arith.constant 0 : index
    %c0_0 = arith.constant 0 : index
    %c0_1 = arith.constant 0 : index
    %0 = vector.load %arg2[%c0, %c0_0, %c0_1] : memref<1x8x100xf32, #tpu.memory_space<vmem>>, vector<1x8x100xf32>
    %1 = vector.shape_cast %0 : vector<1x8x100xf32> to vector<8x100xf32>
    %c0_2 = arith.constant 0 : index
    %c0_3 = arith.constant 0 : index
    %2 = vector.load %arg3[%c0_2, %c0_3] : memref<100x128xf32, #tpu.memory_space<vmem>>, vector<100x128xf32>
    %cst = arith.constant dense<0.000000e+00> : vector<8x128xf32>
    %3 = tpu.matmul %1, %2, %cst {dimension_numbers = #tpu.dot_dimension_numbers<[1], [0], [0], [1], [0, 0, 1, 1], [], []>} : vector<8x100xf32>, vector<100x128xf32>, vector<8x128xf32> -> vector<8x128xf32>
    %c0_4 = arith.constant 0 : index
    %c0_5 = arith.constant 0 : index
    %4 = vector.load %arg4[%c0_4, %c0_5] : memref<1x128xf32, #tpu.memory_space<vmem>>, vector<1x128xf32>
    %5 = vector.broadcast %4 : vector<1x128xf32> to vector<8x128xf32>
    %6 = arith.addf %3, %5 : vector<8x128xf32>
    %c0_6 = arith.constant 0 : index
    %c0_7 = arith.constant 0 : index
    %c0_8 = arith.constant 0 : index
    %7 = vector.load %arg5[%c0_6, %c0_7, %c0_8] : memref<1x128x8xf32, #tpu.memory_space<vmem>>, vector<1x128x8xf32>
    %8 = vector.shape_cast %7 : vector<1x128x8xf32> to vector<128x8xf32>
    %9 = tpu.transpose %8, [1, 0] : vector<128x8xf32> -> vector<8x128xf32>
    %10 = arith.addf %9, %6 : vector<8x128xf32>
    %cst_9 = arith.constant 0.0883883461 : f32
    %11 = vector.broadcast %cst_9 : f32 to vector<8x128xf32>
    %12 = arith.mulf %10, %11 : vector<8x128xf32>
    %cst_10 = arith.constant dense<0xFF800000> : vector<8xf32>
    %13 = vector.multi_reduction <maximumf>, %12, %cst_10 [1] : vector<8x128xf32> to vector<8xf32>
    %14 = vector.shape_cast %13 : vector<8xf32> to vector<8x1xf32>
    %15 = vector.broadcast %14 : vector<8x1xf32> to vector<8x128xf32>
    %16 = arith.subf %12, %15 : vector<8x128xf32>
    %17 = math.exp %16 : vector<8x128xf32>
    %cst_11 = arith.constant dense<0.000000e+00> : vector<8xf32>
    %18 = vector.multi_reduction <add>, %17, %cst_11 [1] : vector<8x128xf32> to vector<8xf32>
    %19 = vector.shape_cast %18 : vector<8xf32> to vector<8x1xf32>
    %20 = tpu.reciprocal %19 {approx = true} : vector<8x1xf32> -> vector<8x1xf32>
    %21 = vector.broadcast %20 : vector<8x1xf32> to vector<8x128xf32>
    %22 = arith.mulf %17, %21 : vector<8x128xf32>
    %c0_12 = arith.constant 0 : index
    %c0_13 = arith.constant 0 : index
    %c0_14 = arith.constant 0 : index
    %23 = vector.load %arg6[%c0_12, %c0_13, %c0_14] : memref<1x8x128xf32, #tpu.memory_space<vmem>>, vector<1x8x128xf32>
    %24 = vector.shape_cast %23 : vector<1x8x128xf32> to vector<8x128xf32>
    %25 = vector.shape_cast %22 : vector<8x128xf32> to vector<1x8x128xf32>
    tpu.vector_store %arg6[%c0_12, %c0_13, %c0_14], %25 {strides = array<i32>} : memref<1x8x128xf32, #tpu.memory_space<vmem>>, vector<1x8x128xf32>,
    return
  }
  func.func @transform_0(%arg0: i32, %arg1: i32) -> (i32, i32, i32) {
    %c0_i32 = arith.constant 0 : i32
    %c0_i32_0 = arith.constant 0 : i32
    return %arg0, %arg1, %c0_i32 : i32, i32, i32
  }
  func.func @transform_1(%arg0: i32, %arg1: i32) -> (i32, i32) {
    %c0_i32 = arith.constant 0 : i32
    %c0_i32_0 = arith.constant 0 : i32
    %c0_i32_1 = arith.constant 0 : i32
    return %c0_i32, %c0_i32_0 : i32, i32
  }
  func.func @transform_2(%arg0: i32, %arg1: i32) -> (i32, i32) {
    %c0_i32 = arith.constant 0 : i32
    %c0_i32_0 = arith.constant 0 : i32
    %c0_i32_1 = arith.constant 0 : i32
    return %c0_i32, %c0_i32_0 : i32, i32
  }
  func.func @transform_3(%arg0: i32, %arg1: i32) -> (i32, i32, i32) {
    %c0_i32 = arith.constant 0 : i32
    %c0_i32_0 = arith.constant 0 : i32
    return %arg0, %c0_i32, %arg1 : i32, i32, i32
  }
  func.func @transform_4(%arg0: i32, %arg1: i32) -> (i32, i32, i32) {
    %c0_i32 = arith.constant 0 : i32
    %c0_i32_0 = arith.constant 0 : i32
    return %arg0, %arg1, %c0_i32 : i32, i32, i32
  }
}

</mosaic_0001>

<llo_original>
// kernel: tpu_custom_call.1
$region0: #{tpu_custom_call.1}
  #allocation0 [shape = 'u32[]', space=smem, size = 0x4, offset = 0x4, fixed_abs, tag = 'smem constant byte address 0x4 - core index']
  #allocation1 [shape = 'u32[144,128]{1,0:T(1,128)}', space=vmem, size = 0x12000, scoped, tag = 'internal scratch']
  %s0 = inlined_call_operand.vmem [shape: f32[2,8,100], index: 0, kind: input, shape index: {}]
  %s1 = inlined_call_operand.vmem [shape: f32[100,128], index: 1, kind: input, shape index: {}]
  %s2 = inlined_call_operand.vmem [shape: f32[1,128], index: 2, kind: input, shape index: {}]
  %s3 = inlined_call_operand.vmem [shape: f32[2,128,8], index: 3, kind: input, shape index: {}]
  %s4 = inlined_call_operand.hbm [shape: f32[2,8,128], index: 4, kind: output, shape index: {}]
  %s5 = sld [smem:[#allocation0]]
  $region49: #{tpu_custom_call.1} parent=0
    _
  %s7 = ssub.s32 1, %s5
  %s8 = scalar_select 0, %s7, %s5
  $region1: #{tpu_custom_call.1} parent=0
    #allocation2 [shape = 'u8[8192]{0}', space=vmem, size = 0x2000, scoped, tag = 'output window, operand 0']
    #allocation3 [shape = 's32[2]{0}', space=sflag, size = 0x8, scoped, tag = 'scoped memory for tpu_custom_call.1']
    %9 = vsyncpa [#allocation3], 0
    %s10 = scalar_lea.sflag [#allocation3], 1
    %11 = vsyncpa %s10, 0
    loop: start=0, step=1, limit=4
    $region2: #{tpu_custom_call.1} parent=1 // loop_pre_header
      _
    $region3: #{tpu_custom_call.1} parent=1 // loop_header
      %s13 = sphi 0, %s17
      %p14 = scmp.ge.s32.totalorder %s13, 4
      %s20 = sphi 0, %s32
      %s21 = sphi 0, %s28
      %s22 = sphi 0, %s20
      %s23 = sphi 0, %s21
      %s24 = sphi 0, %s22
      %s25 = sphi 0, %s23
      %s37 = sphi 0, %s39
      %s40 = sphi 0, %s37
      %s41 = sphi 0, %s40
      %s57 = sphi 0, %s41
      %s61 = sphi 0, %s61
      %s63 = sphi 0, %s61
      %s64 = sphi 0, %s63
      %s78 = sphi 0, %s64
      %s82 = sphi 0, %s82
      %s84 = sphi 0, %s82
      %s85 = sphi 0, %s84
      %s99 = sphi 0, %s85
      %s107 = sphi 0, %s109
      %s110 = sphi 0, %s107
      %s111 = sphi 0, %s110
      %s127 = sphi 0, %s111
      %s135 = sphi 0, %s137
      %s138 = sphi 0, %s135
      %s139 = sphi 0, %s138
      %s155 = sphi 0, %s139
    $region4: #{tpu_custom_call.1} parent=1 // loop_header_branch
      %16 = sbr.rel (%p14) target = $region8
    $region5: #{tpu_custom_call.1} parent=1 // loop_body
      %s18 = ssub.s32 %s13, 1
      %s19 = ssub.s32 %s13, 2
      %s26 = sadd.s32 1, %s21
      %p27 = scmp.ge.s32.totalorder %s26, 1
      %s28 = scalar_select %p27, 0, %s26
      %s29 = sadd.s32 1, %s20
      %s30 = scalar_select %p27, %s29, %s20
      %p31 = scmp.ge.s32.totalorder %s30, 2
      %s32 = scalar_select %p31, 0, %s30
      %s33 = ssub.s32 %s20, %s32
      %s34 = ssub.s32 %s21, %s28
      %s35 = sor.u32 %s33, %s34
      %p36 = scmp.eq.s32.totalorder %s35, 0
      %s38 = sadd.s32 %s37, 1
      %s39 = scalar_select %p36, %s37, %s38
      %p42 = pneg %p36
      %p43 = scmp.eq.s32.totalorder %s13, 1
      %p44 = por %p42, %p43
      %p45 = scmp.ne.s32.totalorder %s37, %s40
      %p46 = scmp.eq.s32.totalorder %s13, 0
      %p47 = por %p45, %p46
      %p48 = scmp.ne.s32.totalorder %s37, %s40
      %p49 = scmp.eq.s32.totalorder %s18, 1
      %p50 = por %p48, %p49
      %p51 = scmp.ne.s32.totalorder %s40, %s41
      %p52 = scmp.eq.s32.totalorder %s18, 0
      %p53 = por %p51, %p52
      %p54 = scmp.ne.s32.totalorder %s40, %s41
      %p55 = scmp.eq.s32.totalorder %s19, 1
      %p56 = por %p54, %p55
      %p58 = scmp.ne.s32.totalorder %s41, %s57
      %p59 = scmp.eq.s32.totalorder %s19, 0
      %p60 = por %p58, %p59
      %s62 = sadd.s32 %s61, 1
      %p65 = scmp.eq.s32.totalorder %s13, 1
      %p66 = scmp.ne.s32.totalorder %s61, %s63
      %p67 = scmp.eq.s32.totalorder %s13, 0
      %p68 = por %p66, %p67
      %p69 = scmp.ne.s32.totalorder %s61, %s63
      %p70 = scmp.eq.s32.totalorder %s18, 1
      %p71 = por %p69, %p70
      %p72 = scmp.ne.s32.totalorder %s63, %s64
      %p73 = scmp.eq.s32.totalorder %s18, 0
      %p74 = por %p72, %p73
      %p75 = scmp.ne.s32.totalorder %s63, %s64
      %p76 = scmp.eq.s32.totalorder %s19, 1
      %p77 = por %p75, %p76
      %p79 = scmp.ne.s32.totalorder %s64, %s78
      %p80 = scmp.eq.s32.totalorder %s19, 0
      %p81 = por %p79, %p80
      %s83 = sadd.s32 %s82, 1
      %p86 = scmp.eq.s32.totalorder %s13, 1
      %p87 = scmp.ne.s32.totalorder %s82, %s84
      %p88 = scmp.eq.s32.totalorder %s13, 0
      %p89 = por %p87, %p88
      %p90 = scmp.ne.s32.totalorder %s82, %s84
      %p91 = scmp.eq.s32.totalorder %s18, 1
      %p92 = por %p90, %p91
      %p93 = scmp.ne.s32.totalorder %s84, %s85
      %p94 = scmp.eq.s32.totalorder %s18, 0
      %p95 = por %p93, %p94
      %p96 = scmp.ne.s32.totalorder %s84, %s85
      %p97 = scmp.eq.s32.totalorder %s19, 1
      %p98 = por %p96, %p97
      %p100 = scmp.ne.s32.totalorder %s85, %s99
      %p101 = scmp.eq.s32.totalorder %s19, 0
      %p102 = por %p100, %p101
      %s103 = ssub.s32 %s20, %s32
      %s104 = ssub.s32 %s21, %s28
      %s105 = sor.u32 %s103, %s104
      %p106 = scmp.eq.s32.totalorder %s105, 0
      %s108 = sadd.s32 %s107, 1
      %s109 = scalar_select %p106, %s107, %s108
      %p112 = pneg %p106
      %p113 = scmp.eq.s32.totalorder %s13, 1
      %p114 = por %p112, %p113
      %p115 = scmp.ne.s32.totalorder %s107, %s110
      %p116 = scmp.eq.s32.totalorder %s13, 0
      %p117 = por %p115, %p116
      %p118 = scmp.ne.s32.totalorder %s107, %s110
      %p119 = scmp.eq.s32.totalorder %s18, 1
      %p120 = por %p118, %p119
      %p121 = scmp.ne.s32.totalorder %s110, %s111
      %p122 = scmp.eq.s32.totalorder %s18, 0
      %p123 = por %p121, %p122
      %p124 = scmp.ne.s32.totalorder %s110, %s111
      %p125 = scmp.eq.s32.totalorder %s19, 1
      %p126 = por %p124, %p125
      %p128 = scmp.ne.s32.totalorder %s111, %s127
      %p129 = scmp.eq.s32.totalorder %s19, 0
      %p130 = por %p128, %p129
      %s131 = ssub.s32 %s20, %s32
      %s132 = ssub.s32 %s21, %s28
      %s133 = sor.u32 %s131, %s132
      %p134 = scmp.eq.s32.totalorder %s133, 0
      %s136 = sadd.s32 %s135, 1
      %s137 = scalar_select %p134, %s135, %s136
      %p140 = pneg %p134
      %p141 = scmp.eq.s32.totalorder %s13, 1
      %p142 = por %p140, %p141
      %p143 = scmp.ne.s32.totalorder %s135, %s138
      %p144 = scmp.eq.s32.totalorder %s13, 0
      %p145 = por %p143, %p144
      %p146 = scmp.ne.s32.totalorder %s135, %s138
      %p147 = scmp.eq.s32.totalorder %s18, 1
      %p148 = por %p146, %p147
      %p149 = scmp.ne.s32.totalorder %s138, %s139
      %p150 = scmp.eq.s32.totalorder %s18, 0
      %p151 = por %p149, %p150
      %p152 = scmp.ne.s32.totalorder %s138, %s139
      %p153 = scmp.eq.s32.totalorder %s19, 1
      %p154 = por %p152, %p153
      %p156 = scmp.ne.s32.totalorder %s139, %s155
      %p157 = scmp.eq.s32.totalorder %s19, 0
      %p158 = por %p156, %p157
      %p159 = scmp.le.s32.totalorder 1, %s13
      %p160 = scmp.lt.s32.totalorder %s13, 3
      %p161 = pnand %p159, %p160
      %p162 = pneg %p161
      // Predicated region
      $region9: #{tpu_custom_call.1} parent=5 // pred_check
        _
      $region10: #{tpu_custom_call.1} parent=5 // pred_check_branch
        %164 = sbr.rel (%p161) target = $region12
      $region11: #{tpu_custom_call.1} parent=5 // pred_region
        %s165 = ssub.s32 %s13, 1
        // Predicated region
        $region13: #{tpu_custom_call.1} parent=11 // pred_check
          %p166 = pneg %p74
        $region14: #{tpu_custom_call.1} parent=11 // pred_check_branch
          %168 = sbr.rel (%p166) target = $region16
        $region15: #{tpu_custom_call.1} parent=11 // pred_region
          _
        $region16: #{tpu_custom_call.1} parent=11 // pred_fallthru
          _
        // Predicated region
        $region17: #{tpu_custom_call.1} parent=11 // pred_check
          %p169 = pneg %p95
        $region18: #{tpu_custom_call.1} parent=11 // pred_check_branch
          %171 = sbr.rel (%p169) target = $region20
        $region19: #{tpu_custom_call.1} parent=11 // pred_region
          _
        $region20: #{tpu_custom_call.1} parent=11 // pred_fallthru
          _
      $region12: #{tpu_custom_call.1} parent=5 // pred_fallthru
        _
      %p172 = scmp.lt.s32.totalorder %s13, 2
      // Predicated region
      $region21: #{tpu_custom_call.1} parent=5 // pred_check
        %p173 = pneg %p172
      $region22: #{tpu_custom_call.1} parent=5 // pred_check_branch
        %175 = sbr.rel (%p173) target = $region24
      $region23: #{tpu_custom_call.1} parent=5 // pred_region
        // Predicated region
        $region25: #{tpu_custom_call.1} parent=23 // pred_check
          %p176 = pneg %p47
        $region26: #{tpu_custom_call.1} parent=23 // pred_check_branch
          %178 = sbr.rel (%p176) target = $region28
        $region27: #{tpu_custom_call.1} parent=23 // pred_region
          %p179 = scmp.lt.s32.totalorder %s20, 1
          %s180 = scalar_select %p179, %s20, 1
          %p181 = scmp.lt.s32.totalorder %s21, 0
          %s182 = scalar_select %p181, %s21, 0
          %s183 = sadd.s32 %s182, %s180
          %s184 = smul.addr %s183, 8
          %s185 = scalar_lea.vmem %s0, %s184
        $region28: #{tpu_custom_call.1} parent=23 // pred_fallthru
          _
        // Predicated region
        $region29: #{tpu_custom_call.1} parent=23 // pred_check
          %p186 = pneg %p117
        $region30: #{tpu_custom_call.1} parent=23 // pred_check_branch
          %188 = sbr.rel (%p186) target = $region32
        $region31: #{tpu_custom_call.1} parent=23 // pred_region
          %p189 = scmp.lt.s32.totalorder %s20, 1
          %s190 = scalar_select %p189, %s20, 1
          %p191 = scmp.lt.s32.totalorder %s21, 0
          %s192 = scalar_select %p191, %s21, 0
          %s193 = smul.addr %s190, 16
          %s194 = sadd.s32 %s192, %s193
          %s195 = smul.addr %s194, 8
          %s196 = scalar_lea.vmem %s3, %s195
        $region32: #{tpu_custom_call.1} parent=23 // pred_fallthru
          _
      $region24: #{tpu_custom_call.1} parent=5 // pred_fallthru
        _
      %p197 = scmp.le.s32.totalorder 1, %s13
      %p198 = scmp.lt.s32.totalorder %s13, 3
      %p199 = pnand %p197, %p198
      %p200 = pneg %p199
      // Predicated region
      $region33: #{tpu_custom_call.1} parent=5 // pred_check
        _
      $region34: #{tpu_custom_call.1} parent=5 // pred_check_branch
        %202 = sbr.rel (%p199) target = $region36
      $region35: #{tpu_custom_call.1} parent=5 // pred_region
        %s203 = ssub.s32 %s13, 1
        %p204 = scmp.lt.s32.totalorder %s22, 1
        %s205 = scalar_select %p204, %s22, 1
        %p206 = scmp.lt.s32.totalorder %s23, 0
        %s207 = scalar_select %p206, %s23, 0
        %s208 = sadd.s32 %s207, %s205
        %s209 = smul.addr %s208, 8
        %s210 = scalar_lea.vmem %s0, %s209
        %p211 = pneg %p53
        %p212 = pneg %p50
        %p213 = pneg %p74
        %p214 = pneg %p71
        %p215 = pneg %p95
        %p216 = pneg %p92
        %p217 = scmp.lt.s32.totalorder %s22, 1
        %s218 = scalar_select %p217, %s22, 1
        %p219 = scmp.lt.s32.totalorder %s23, 0
        %s220 = scalar_select %p219, %s23, 0
        %s221 = smul.addr %s218, 16
        %s222 = sadd.s32 %s220, %s221
        %s223 = smul.addr %s222, 8
        %s224 = scalar_lea.vmem %s3, %s223
        %p225 = pneg %p123
        %p226 = pneg %p120
        %p227 = pneg %p151
        %p228 = pneg %p148
        %s229 = sand.u32 %s138, 1
        %s230 = scalar_lea.sflag [#allocation3], %s229
        %s231 = sand.u32 %s138, 1
        %s232 = smul.addr %s231, 8
        %s233 = scalar_lea.vmem [#allocation2], %s232
        %p234 = scmp.lt.s32.totalorder %s22, 1
        %s235 = scalar_select %p234, %s22, 1
        %p236 = scmp.lt.s32.totalorder %s23, 0
        %s237 = scalar_select %p236, %s23, 0
        %s238 = sadd.s32 %s237, %s235
        %s239 = smul.addr %s238, 8
        %s240 = scalar_lea.vmem %s0, %s239
        %p241 = scmp.lt.s32.totalorder %s22, 1
        %s242 = scalar_select %p241, %s22, 1
        %p243 = scmp.lt.s32.totalorder %s23, 0
        %s244 = scalar_select %p243, %s23, 0
        %s245 = smul.addr %s242, 16
        %s246 = sadd.s32 %s244, %s245
        %s247 = smul.addr %s246, 8
        %s248 = scalar_lea.vmem %s3, %s247
        %v249 = vld [vmem:[%s240] sm:$0xff]
        %v250 = vld [vmem:[%s1] sm:$0xff]
        %v251 = vld [vmem:[%s1 + $0x8] sm:$0xff]
        %v252 = vld [vmem:[%s1 + $0x10] sm:$0xff]
        %v253 = vld [vmem:[%s1 + $0x18] sm:$0xff]
        %v254 = vld [vmem:[%s1 + $0x20] sm:$0xff]
        %v255 = vld [vmem:[%s1 + $0x28] sm:$0xff]
        %v256 = vld [vmem:[%s1 + $0x30] sm:$0xff]
        %v257 = vld [vmem:[%s1 + $0x38] sm:$0xff]
        %v258 = vld [vmem:[%s1 + $0x40] sm:$0xff]
        %v259 = vld [vmem:[%s1 + $0x48] sm:$0xff]
        %v260 = vld [vmem:[%s1 + $0x50] sm:$0xff]
        %v261 = vld [vmem:[%s1 + $0x58] sm:$0xff]
        %v262 = vld [vmem:[%s1 + $0x60] sm:$0xf]
        %v263 = vld [vmem:[%s2] sm:$0x1]
        %v265 = vlaneseq
        %v266 = vshrl.u32 %v265, 7
        %v267 = vsub.s32 0, %v266
        %v268 = vrot.slane %v263, %v267
        %vm270 = vcmask 818176
        %v272 = vsel %vm270, %v249, 0
        %vm274 = vcmask 1043456
        %v276 = vsel %vm274, %v262, 0
        %278 = vmatprep.subr.mxu0 0.0
        %279 = vmatpush1.msra.mxu0 %v250
        %280 = vmatprep.subr.mxu0 0.0
        %281 = vmatpush1.msra.mxu0 %v251
        %282 = vmatprep.subr.mxu0 0.0
        %283 = vmatpush1.msra.mxu0 %v252
        %284 = vmatprep.subr.mxu0 0.0
        %285 = vmatpush1.msra.mxu0 %v253
        %286 = vmatprep.subr.mxu0 0.0
        %287 = vmatpush1.msra.mxu0 %v254
        %288 = vmatprep.subr.mxu0 0.0
        %289 = vmatpush1.msra.mxu0 %v255
        %290 = vmatprep.subr.mxu0 0.0
        %291 = vmatpush1.msra.mxu0 %v256
        %292 = vmatprep.subr.mxu0 0.0
        %293 = vmatpush1.msra.mxu0 %v257
        %294 = vmatprep.subr.mxu0 0.0
        %295 = vmatpush1.msra.mxu0 %v258
        %296 = vmatprep.subr.mxu0 0.0
        %297 = vmatpush1.msra.mxu0 %v259
        %298 = vmatprep.subr.mxu0 0.0
        %299 = vmatpush1.msra.mxu0 %v260
        %300 = vmatprep.subr.mxu0 0.0
        %301 = vmatpush1.msra.mxu0 %v261
        %302 = vmatprep.subr.mxu0 0.0
        %303 = vmatpush1.msra.mxu0 %v276
        %304 = vmatprep.subr.mxu0 0.0
        %305 = vmatpush1.msra.mxu0 0.0
        %306 = vmatprep.subr.mxu0 0.0
        %307 = vmatpush1.msra.mxu0 0.0
        %308 = vmatprep.subr.mxu0 0.0
        %309 = vmatpush1.msra.mxu0 0.0
        %310 = vmatprep.subr.mxu0 0.0
        %311 = vmatpush1.msra.mxu0 0.0
        %312 = vmatprep.subr.mxu0 0.0
        %313 = vmatpush1.msra.mxu0 0.0
        %314 = vmatprep.subr.mxu0 0.0
        %315 = vmatpush1.msra.mxu0 0.0
        %316 = vmatprep.subr.mxu0 0.0
        %317 = vmatpush1.msra.mxu0 0.0
        %318 = vmatprep.subr.mxu0 0.0
        %319 = vmatpush1.msra.mxu0 0.0
        %320 = vmatprep.subr.mxu0 0.0
        %321 = vmatpush1.msra.mxu0 0.0
        %322 = vmatprep.subr.mxu0 0.0
        %323 = vmatpush1.msra.mxu0 0.0
        %324 = vmatprep.subr.mxu0 0.0
        %325 = vmatpush1.msra.mxu0 0.0
        %326 = vmatprep.subr.mxu0 0.0
        %327 = vmatpush1.msra.mxu0 0.0
        %328 = vmatprep.subr.mxu0 0.0
        %329 = vmatpush1.msra.mxu0 0.0
        %330 = vmatprep.subr.mxu0 0.0
        %331 = vmatpush1.msra.mxu0 0.0
        %332 = vmatprep.subr.mxu0 0.0
        %333 = vmatpush1.msra.mxu0 0.0
        %334 = vmatprep.subr.mxu0 0.0
        %335 = vmatpush1.msra.mxu0 0.0
        %336 = vmatprep.subr.mxu0 0.0
        %337 = vmatpush1.msra.mxu0 0.0
        %338 = vmatprep.subr.mxu0 0.0
        %339 = vmatpush1.msra.mxu0 0.0
        %340 = vmatprep.subr.mxu0 0.0
        %341 = vmatpush1.msra.mxu0 0.0
        %342 = vmatprep.mubr.f32.mxu0 0.0
        %343 = vmatmul.mubr.f32.gmra.mrb[0].mxu0 %v272
        %v344 = vpop.f32.mrb[0].mxu0
        %v345 = vadd.f32 %v268, %v344
        %v346 = vpop.f32.mrb[0].mxu0
        %347 = vdwg.mxu0
        %v348 = vld [vmem:[%s248] sm:$0xff]
        %v349 = vld [vmem:[%s248 + $0x8] sm:$0xff]
        %v350 = vld [vmem:[%s248 + $0x10] sm:$0xff]
        %v351 = vld [vmem:[%s248 + $0x18] sm:$0xff]
        %v352 = vld [vmem:[%s248 + $0x20] sm:$0xff]
        %v353 = vld [vmem:[%s248 + $0x28] sm:$0xff]
        %v354 = vld [vmem:[%s248 + $0x30] sm:$0xff]
        %v355 = vld [vmem:[%s248 + $0x38] sm:$0xff]
        %v356 = vld [vmem:[%s248 + $0x40] sm:$0xff]
        %v357 = vld [vmem:[%s248 + $0x48] sm:$0xff]
        %v358 = vld [vmem:[%s248 + $0x50] sm:$0xff]
        %v359 = vld [vmem:[%s248 + $0x58] sm:$0xff]
        %v360 = vld [vmem:[%s248 + $0x60] sm:$0xff]
        %v361 = vld [vmem:[%s248 + $0x68] sm:$0xff]
        %v362 = vld [vmem:[%s248 + $0x70] sm:$0xff]
        %v363 = vld [vmem:[%s248 + $0x78] sm:$0xff]
        %364 = vxpose.xlu0.b32.start [1/16] %v348, 128
        %365 = vxpose.xlu0.b32.cont [2/16] %v349, 128
        %366 = vxpose.xlu0.b32.cont [3/16] %v350, 128
        %367 = vxpose.xlu0.b32.cont [4/16] %v351, 128
        %368 = vxpose.xlu0.b32.cont [5/16] %v352, 128
        %369 = vxpose.xlu0.b32.cont [6/16] %v353, 128
        %370 = vxpose.xlu0.b32.cont [7/16] %v354, 128
        %371 = vxpose.xlu0.b32.cont [8/16] %v355, 128
        %372 = vxpose.xlu0.b32.cont [9/16] %v356, 128
        %373 = vxpose.xlu0.b32.cont [10/16] %v357, 128
        %374 = vxpose.xlu0.b32.cont [11/16] %v358, 128
        %375 = vxpose.xlu0.b32.cont [12/16] %v359, 128
        %376 = vxpose.xlu0.b32.cont [13/16] %v360, 128
        %377 = vxpose.xlu0.b32.cont [14/16] %v361, 128
        %378 = vxpose.xlu0.b32.cont [15/16] %v362, 128
        %379 = vxpose.xlu0.b32.end [16/16] %v363, 128
        %v380 = vpop.trf.xlu0
        %v381 = vpop.trf.xlu0
        %v382 = vpop.trf.xlu0
        %v383 = vpop.trf.xlu0
        %v384 = vpop.trf.xlu0
        %v385 = vpop.trf.xlu0
        %v386 = vpop.trf.xlu0
        %v387 = vpop.trf.xlu0
        %v388 = vpop.trf.xlu0
        %v389 = vpop.trf.xlu0
        %v390 = vpop.trf.xlu0
        %v391 = vpop.trf.xlu0
        %v392 = vpop.trf.xlu0
        %v393 = vpop.trf.xlu0
        %v394 = vpop.trf.xlu0
        %v395 = vpop.trf.xlu0
        %v396 = vadd.f32 %v380, %v345
        %v397 = vmul.f32 %v396, 0.088388346
        %398 = vmax.xlane.f32.xlu0 %v397
        %v399 = vpop.xlane.xlu0 %398
        %v400 = vsub.f32 %v397, %v399
        %v401 = vmul.f32 %v400, 1.442695
        %v402 = vpow.pop %v401
        %403 = vadd.xlane.f32.xlu0 %v402
        %v404 = vpop.xlane.xlu0 %403
        %v405 = vrcp.pop %v404
        %v406 = vmul.f32 %v402, %v405
        %407 = vst [vmem:[%s233] sm:$0xff] %v406
        %s408 = sand.u32 %s138, 1
        %s409 = scalar_lea.sflag [#allocation3], %s408
        %s410 = sand.u32 %s138, 1
        %s411 = smul.addr %s410, 8
        %s412 = scalar_lea.vmem [#allocation2], %s411
        // Predicated region
        $region37: #{tpu_custom_call.1} parent=35 // pred_check
          %p413 = pneg %p148
        $region38: #{tpu_custom_call.1} parent=35 // pred_check_branch
          %415 = sbr.rel (%p413) target = $region40
        $region39: #{tpu_custom_call.1} parent=35 // pred_region
          %s417 = ssub.s32 128, 128
          %418 = vsyncadd %s409, %s417
          %s419 = sadd.s32 %s23, %s22
          %s420 = smul.addr %s419, 128
          %s421 = scalar_lea.hbm %s4, %s420
          %s423 = sshll.u32 %s412, 4
          %s424 = int_to_ptr.vmem [resolvable:$true] %s423
          %426 = dma.vmem_to_hbm [thread:$0]  %s424, 128, %s421, %s409
        $region40: #{tpu_custom_call.1} parent=35 // pred_fallthru
          _
      $region36: #{tpu_custom_call.1} parent=5 // pred_fallthru
        _
      %p427 = scmp.le.s32.totalorder 2, %s13
      // Predicated region
      $region41: #{tpu_custom_call.1} parent=5 // pred_check
        %p428 = pneg %p427
      $region42: #{tpu_custom_call.1} parent=5 // pred_check_branch
        %430 = sbr.rel (%p428) target = $region44
      $region43: #{tpu_custom_call.1} parent=5 // pred_region
        %s431 = ssub.s32 %s13, 2
        // Predicated region
        $region45: #{tpu_custom_call.1} parent=43 // pred_check
          %p432 = pneg %p154
        $region46: #{tpu_custom_call.1} parent=43 // pred_check_branch
          %434 = sbr.rel (%p432) target = $region48
        $region47: #{tpu_custom_call.1} parent=43 // pred_region
          %s435 = sand.u32 %s139, 1
          %s436 = scalar_lea.sflag [#allocation3], %s435
          %s437 = sand.u32 %s139, 1
          %s438 = smul.addr %s437, 8
          %s439 = scalar_lea.vmem [#allocation2], %s438
          %440 = dma.done %s436, 128
        $region48: #{tpu_custom_call.1} parent=43 // pred_fallthru
          _
      $region44: #{tpu_custom_call.1} parent=5 // pred_fallthru
        _
    $region6: #{tpu_custom_call.1} parent=1 // loop_footer
      %s17 = sadd.s32 1, %s13
    $region7: #{tpu_custom_call.1} parent=1 // loop_footer_branch
      %12 = sbr.rel target = $region3
    $region8: #{tpu_custom_call.1} parent=1 // loop_exit
      _
    %441 = vsyncpa [#allocation3], 1
    %s442 = scalar_lea.sflag [#allocation3], 1
    %443 = vsyncpa %s442, 1

</llo_original>
